<compile_context>
chip_gen: v7x
topology: tpu7x:2x2x1
jax: 0.10.0
libtpu: 0.0.40
codegen_flags: <defaults>
</compile_context>

<pallas_src>
import functools

import jax
import jax.numpy as jnp
from jax import lax
from jax.experimental import pallas as pl
from jax.experimental.pallas import tpu as pltpu

_EPS = 1e-5  # torch.nn.LayerNorm default


def _prenorm_linear_kernel(x_ref, w_ref, b_ref, o_ref, *, exact):
    # LayerNorm over the last (lane) dim in f32, centered two-pass variance.
    x = x_ref[...].astype(jnp.float32)            # (TM, D)
    mean = jnp.mean(x, axis=-1, keepdims=True)
    centered = x - mean
    var = jnp.mean(centered * centered, axis=-1, keepdims=True)
    y = centered * lax.rsqrt(var + _EPS)          # LN affine folded into W/b

    w = w_ref[...]                                # (D, TN)
    if exact:
        w = w.astype(jnp.float32)                 # exact f32 MXU path
    else:
        y = y.astype(jnp.bfloat16)                # bf16 MXU operands,
        w = w.astype(jnp.bfloat16)                # f32 accumulation
    out = jnp.dot(y, w, preferred_element_type=jnp.float32)
    out = out + b_ref[...].astype(jnp.float32)    # (1, TN) bias
    o_ref[...] = out.astype(o_ref.dtype)


def fold_prenorm_linear_params(gamma, beta, w, b):
    """Fold the LayerNorm affine into the Linear weights (one-time transform).

    (xn * gamma + beta) @ W + b == xn @ (gamma[:,None] * W) + (beta @ W + b)
    Accepts 1-D or 2-D gamma / beta / b.
    """
    gamma = gamma.reshape(-1).astype(jnp.float32)          # (D,)
    beta = beta.reshape(-1).astype(jnp.float32)            # (D,)
    wf = w.astype(jnp.float32)                             # (D, Dout)
    bf = b.reshape(1, -1).astype(jnp.float32)              # (1, Dout)
    w_folded = gamma[:, None] * wf
    b_folded = bf + beta[None, :] @ wf
    return w_folded, b_folded


def prenorm_fn(x, gamma, beta, w, b, *, tm=None, tn=None, exact=False,
               out_dtype=None):
    """PreNorm with fn = Linear: (B, N, D) -> (B, N, Dout)."""
    B, N, D = x.shape
    Dout = w.shape[-1]
    M = B * N
    out_dtype = jnp.dtype(out_dtype) if out_dtype is not None else x.dtype
    x2 = x.reshape(M, D)

    # One-time weight transform.
    # TODO(synk): hoist fold_prenorm_linear_params to model/param init so it
    # is not replayed on every forward call.
    w_f, b_f = fold_prenorm_linear_params(gamma, beta, w, b)
    if not exact:
        w_f = w_f.astype(jnp.bfloat16)   # half the weight HBM read / VMEM

    x_bytes = x2.dtype.itemsize
    w_bytes = w_f.dtype.itemsize
    o_bytes = jnp.dtype(out_dtype).itemsize

    # ---- per-generation VMEM budget & tile sizing ---------------------------
    try:
        vmem_cap = int(pltpu.get_tpu_info().vmem_capacity_bytes)
    except Exception:
        vmem_cap = 64 * 1024 * 1024          # conservative (v7x-sized) fallback
    vmem_limit = min(vmem_cap * 3 // 4, 96 * 1024 * 1024)  # 96 MiB v5e/v6e, 48 MiB v7x

    # Dout tile: keep W fully resident when it fits comfortably, otherwise a
    # second grid axis tiles Dout in 128-lane multiples (large-D / v7x case).
    if tn is None:
        if D * Dout * w_bytes <= vmem_limit * 2 // 5:
            tn = Dout
        else:
            tn = max(128, (vmem_limit * 2 // 5) // (2 * D * w_bytes) // 128 * 128)
    tn = min(tn, Dout)
    n_col = pl.cdiv(Dout, tn)
    w_resident = n_col == 1

    # Row tile: fill the budget with double-buffered x/out tiles + resident W,
    # leaving headroom for the f32 compute temporaries.
    if tm is None:
        per_row = 2 * D * x_bytes + 2 * tn * o_bytes + 4 * (D + tn)
        resident = D * tn * w_bytes * (1 if w_resident else 2)
        budget = max(vmem_limit * 7 // 10 - resident, 8 * per_row)
        tm = max(8, min(2048, budget // per_row) // 8 * 8)
    tm = min(tm, M)
    # Keep the row grid >= 2 steps so the "parallel" axis feeds both v7x TCs.
    if tm >= M and M > 8:
        tm = min(M, (pl.cdiv(M, 2) + 7) // 8 * 8)
    n_row = pl.cdiv(M, tm)

    flops = 2 * M * D * Dout + 7 * M * D
    bytes_accessed = (x2.size * x_bytes
                      + w_f.size * w_bytes * (1 if w_resident else n_row)
                      + b_f.size * 4
                      + M * Dout * o_bytes)

    def _run(resident_mode):
        kw = {} if resident_mode is None else {"pipeline_mode": resident_mode}
        if w_resident:
            w_spec = pl.BlockSpec((D, tn), lambda i, j: (0, j), **kw)
            b_spec = pl.BlockSpec((1, tn), lambda i, j: (0, j), **kw)
        else:
            w_spec = pl.BlockSpec((D, tn), lambda i, j: (0, j))
            b_spec = pl.BlockSpec((1, tn), lambda i, j: (0, j))
        return pl.pallas_call(
            functools.partial(_prenorm_linear_kernel, exact=exact),
            out_shape=jax.ShapeDtypeStruct((M, Dout), out_dtype),
            grid_spec=pltpu.PrefetchScalarGridSpec(
                num_scalar_prefetch=0,
                grid=(n_row, n_col),
                in_specs=[
                    pl.BlockSpec((tm, D), lambda i, j: (i, 0)),   # x (pipelined)
                    w_spec,                                        # W
                    b_spec,                                        # bias
                ],
                out_specs=pl.BlockSpec((tm, tn), lambda i, j: (i, j)),
            ),
            compiler_params=pltpu.CompilerParams(
                dimension_semantics=("parallel", "arbitrary"),
                vmem_limit_bytes=int(vmem_limit),
            ),
            cost_estimate=pl.CostEstimate(
                flops=flops, transcendentals=M, bytes_accessed=bytes_accessed),
        )(x2, w_f, b_f)

    if w_resident:
        try:
            # Constant-index resident operands -> single buffer (saves VMEM,
            # lets tm grow; crucial on v7x's 64 MiB VMEM).
            out2 = jax.block_until_ready(_run(pl.Buffered(1)))
        except Exception:
            # Fallback for Pallas versions that reject single-buffered specs.
            out2 = _run(None)
    else:
        out2 = _run(None)

    return out2.reshape(B, N, Dout)


def _reference(x, gamma, beta, w, b):
    xf = x.astype(jnp.float32)
    mean = jnp.mean(xf, axis=-1, keepdims=True)
    var = jnp.mean((xf - mean) ** 2, axis=-1, keepdims=True)
    xn = (xf - mean) * lax.rsqrt(var + _EPS)
    y = xn * gamma.reshape(-1).astype(jnp.float32) + beta.reshape(-1).astype(jnp.float32)
    out = y @ w.astype(jnp.float32) + b.reshape(1, -1).astype(jnp.float32)
    return out.astype(x.dtype)


if __name__ == "__main__":
    B, N, D = 2, 8, 32  # batch, seq, hidden (LayerNorm dim); fn = Linear(D, D)
    key = jax.random.PRNGKey(0)
    kx, kg, kb, kw, kbias = jax.random.split(key, 5)

    x = jax.random.normal(kx, (B, N, D), dtype=jnp.float32)

    # Deterministic parameters (LayerNorm affine + fn = Linear(D, D)).
    gamma = (jnp.ones((1, D), jnp.float32)
             + 0.01 * jax.random.normal(kg, (1, D), dtype=jnp.float32))
    beta = 0.01 * jax.random.normal(kb, (1, D), dtype=jnp.float32)
    w = jax.random.normal(kw, (D, D), dtype=jnp.float32) / jnp.sqrt(D)
    bias = 0.01 * jax.random.normal(kbias, (1, D), dtype=jnp.float32)

    ref = _reference(x, gamma, beta, w, bias)

    # Exact f32 MXU path: must match the f32 reference tightly.
    out_exact = jax.block_until_ready(
        prenorm_fn(x, gamma, beta, w, bias, exact=True))
    assert out_exact.shape == (B, N, D)
    assert jnp.allclose(out_exact, ref, atol=1e-4, rtol=1e-4), "exact path mismatch"

    # Default fast path: bf16 MXU operands with f32 accumulation.
    out_fast = jax.block_until_ready(prenorm_fn(x, gamma, beta, w, bias))
    assert out_fast.shape == (B, N, D)
    assert jnp.allclose(out_fast, ref, atol=5e-2, rtol=5e-2), "bf16 path mismatch"

    print("KERNEL_OK")
</pallas_src>

<mosaic_0001>
module attributes {stable_mosaic.version = 11 : i64} {
  func.func @_prenorm_linear_kernel(%arg0: i32, %arg1: i32, %arg2: memref<8x32xf32, #tpu.memory_space<vmem>>, %arg3: memref<32x32xf32, #tpu.memory_space<vmem>>, %arg4: memref<1x32xf32, #tpu.memory_space<vmem>>, %arg5: memref<8x32xf32, #tpu.memory_space<vmem>>) attributes {dimension_semantics = [#tpu.dimension_semantics<parallel>, #tpu.dimension_semantics<arbitrary>], iteration_bounds = array<i64: 2, 1>, scalar_prefetch = 0 : i64, scratch_operands = 0 : i64, tpu.core_type = #tpu.core_type<tc>, window_params = [{transform_indices = @transform_0, window_bounds = array<i64: 8, 32>}, {pipeline_mode = #tpu.pipeline_mode<synchronous>, transform_indices = @transform_1, window_bounds = array<i64: 32, 32>}, {pipeline_mode = #tpu.pipeline_mode<synchronous>, transform_indices = @transform_2, window_bounds = array<i64: 1, 32>}, {transform_indices = @transform_3, window_bounds = array<i64: 8, 32>}]} {
    %c0 = arith.constant 0 : index
    %c0_0 = arith.constant 0 : index
    %0 = vector.load %arg2[%c0, %c0_0] : memref<8x32xf32, #tpu.memory_space<vmem>>, vector<8x32xf32>
    %cst = arith.constant dense<0.000000e+00> : vector<8xf32>
    %1 = vector.multi_reduction <add>, %0, %cst [1] : vector<8x32xf32> to vector<8xf32>
    %2 = vector.shape_cast %1 : vector<8xf32> to vector<8x1xf32>
    %cst_1 = arith.constant 3.200000e+01 : f32
    %3 = vector.broadcast %cst_1 : f32 to vector<8x1xf32>
    %4 = arith.divf %2, %3 : vector<8x1xf32>
    %5 = vector.broadcast %4 : vector<8x1xf32> to vector<8x32xf32>
    %6 = arith.subf %0, %5 : vector<8x32xf32>
    %7 = arith.mulf %6, %6 : vector<8x32xf32>
    %cst_2 = arith.constant dense<0.000000e+00> : vector<8xf32>
    %8 = vector.multi_reduction <add>, %7, %cst_2 [1] : vector<8x32xf32> to vector<8xf32>
    %9 = vector.shape_cast %8 : vector<8xf32> to vector<8x1xf32>
    %cst_3 = arith.constant 3.200000e+01 : f32
    %10 = vector.broadcast %cst_3 : f32 to vector<8x1xf32>
    %11 = arith.divf %9, %10 : vector<8x1xf32>
    %cst_4 = arith.constant 9.99999974E-6 : f32
    %12 = vector.broadcast %cst_4 : f32 to vector<8x1xf32>
    %13 = arith.addf %11, %12 : vector<8x1xf32>
    %14 = math.rsqrt %13 : vector<8x1xf32>
    %15 = vector.broadcast %14 : vector<8x1xf32> to vector<8x32xf32>
    %16 = arith.mulf %6, %15 : vector<8x32xf32>
    %c0_5 = arith.constant 0 : index
    %c0_6 = arith.constant 0 : index
    %17 = vector.load %arg3[%c0_5, %c0_6] : memref<32x32xf32, #tpu.memory_space<vmem>>, vector<32x32xf32>
    %cst_7 = arith.constant dense<0.000000e+00> : vector<8x32xf32>
    %18 = tpu.matmul %16, %17, %cst_7 {dimension_numbers = #tpu.dot_dimension_numbers<[1], [0], [0], [1], [0, 0, 1, 1], [], []>} : vector<8x32xf32>, vector<32x32xf32>, vector<8x32xf32> -> vector<8x32xf32>
    %c0_8 = arith.constant 0 : index
    %c0_9 = arith.constant 0 : index
    %19 = vector.load %arg4[%c0_8, %c0_9] : memref<1x32xf32, #tpu.memory_space<vmem>>, vector<1x32xf32>
    %20 = vector.broadcast %19 : vector<1x32xf32> to vector<8x32xf32>
    %21 = arith.addf %18, %20 : vector<8x32xf32>
    %c0_10 = arith.constant 0 : index
    %c0_11 = arith.constant 0 : index
    %22 = vector.load %arg5[%c0_10, %c0_11] : memref<8x32xf32, #tpu.memory_space<vmem>>, vector<8x32xf32>
    tpu.vector_store %arg5[%c0_10, %c0_11], %21 {strides = array<i32>} : memref<8x32xf32, #tpu.memory_space<vmem>>, vector<8x32xf32>,
    return
  }
  func.func @transform_0(%arg0: i32, %arg1: i32) -> (i32, i32) {
    %c0_i32 = arith.constant 0 : i32
    %c0_i32_0 = arith.constant 0 : i32
    return %arg0, %c0_i32 : i32, i32
  }
  func.func @transform_1(%arg0: i32, %arg1: i32) -> (i32, i32) {
    %c0_i32 = arith.constant 0 : i32
    %c0_i32_0 = arith.constant 0 : i32
    return %c0_i32, %arg1 : i32, i32
  }
  func.func @transform_2(%arg0: i32, %arg1: i32) -> (i32, i32) {
    %c0_i32 = arith.constant 0 : i32
    %c0_i32_0 = arith.constant 0 : i32
    return %c0_i32, %arg1 : i32, i32
  }
  func.func @transform_3(%arg0: i32, %arg1: i32) -> (i32, i32) {
    %c0_i32 = arith.constant 0 : i32
    return %arg0, %arg1 : i32, i32
  }
}

module attributes {stable_mosaic.version = 11 : i64} {
  func.func @_prenorm_linear_kernel(%arg0: i32, %arg1: i32, %arg2: memref<8x32xf32, #tpu.memory_space<vmem>>, %arg3: memref<32x32xf32, #tpu.memory_space<vmem>>, %arg4: memref<1x32xf32, #tpu.memory_space<vmem>>, %arg5: memref<8x32xf32, #tpu.memory_space<vmem>>) attributes {dimension_semantics = [#tpu.dimension_semantics<parallel>, #tpu.dimension_semantics<arbitrary>], iteration_bounds = array<i64: 2, 1>, scalar_prefetch = 0 : i64, scratch_operands = 0 : i64, tpu.core_type = #tpu.core_type<tc>, window_params = [{transform_indices = @transform_0, window_bounds = array<i64: 8, 32>}, {transform_indices = @transform_1, window_bounds = array<i64: 32, 32>}, {transform_indices = @transform_2, window_bounds = array<i64: 1, 32>}, {transform_indices = @transform_3, window_bounds = array<i64: 8, 32>}]} {
    %c0 = arith.constant 0 : index
    %c0_0 = arith.constant 0 : index
    %0 = vector.load %arg2[%c0, %c0_0] : memref<8x32xf32, #tpu.memory_space<vmem>>, vector<8x32xf32>
    %cst = arith.constant dense<0.000000e+00> : vector<8xf32>
    %1 = vector.multi_reduction <add>, %0, %cst [1] : vector<8x32xf32> to vector<8xf32>
    %2 = vector.shape_cast %1 : vector<8xf32> to vector<8x1xf32>
    %cst_1 = arith.constant 3.200000e+01 : f32
    %3 = vector.broadcast %cst_1 : f32 to vector<8x1xf32>
    %4 = arith.divf %2, %3 : vector<8x1xf32>
    %5 = vector.broadcast %4 : vector<8x1xf32> to vector<8x32xf32>
    %6 = arith.subf %0, %5 : vector<8x32xf32>
    %7 = arith.mulf %6, %6 : vector<8x32xf32>
    %cst_2 = arith.constant dense<0.000000e+00> : vector<8xf32>
    %8 = vector.multi_reduction <add>, %7, %cst_2 [1] : vector<8x32xf32> to vector<8xf32>
    %9 = vector.shape_cast %8 : vector<8xf32> to vector<8x1xf32>
    %cst_3 = arith.constant 3.200000e+01 : f32
    %10 = vector.broadcast %cst_3 : f32 to vector<8x1xf32>
    %11 = arith.divf %9, %10 : vector<8x1xf32>
    %cst_4 = arith.constant 9.99999974E-6 : f32
    %12 = vector.broadcast %cst_4 : f32 to vector<8x1xf32>
    %13 = arith.addf %11, %12 : vector<8x1xf32>
    %14 = math.rsqrt %13 : vector<8x1xf32>
    %15 = vector.broadcast %14 : vector<8x1xf32> to vector<8x32xf32>
    %16 = arith.mulf %6, %15 : vector<8x32xf32>
    %c0_5 = arith.constant 0 : index
    %c0_6 = arith.constant 0 : index
    %17 = vector.load %arg3[%c0_5, %c0_6] : memref<32x32xf32, #tpu.memory_space<vmem>>, vector<32x32xf32>
    %cst_7 = arith.constant dense<0.000000e+00> : vector<8x32xf32>
    %18 = tpu.matmul %16, %17, %cst_7 {dimension_numbers = #tpu.dot_dimension_numbers<[1], [0], [0], [1], [0, 0, 1, 1], [], []>} : vector<8x32xf32>, vector<32x32xf32>, vector<8x32xf32> -> vector<8x32xf32>
    %c0_8 = arith.constant 0 : index
    %c0_9 = arith.constant 0 : index
    %19 = vector.load %arg4[%c0_8, %c0_9] : memref<1x32xf32, #tpu.memory_space<vmem>>, vector<1x32xf32>
    %20 = vector.broadcast %19 : vector<1x32xf32> to vector<8x32xf32>
    %21 = arith.addf %18, %20 : vector<8x32xf32>
    %c0_10 = arith.constant 0 : index
    %c0_11 = arith.constant 0 : index
    %22 = vector.load %arg5[%c0_10, %c0_11] : memref<8x32xf32, #tpu.memory_space<vmem>>, vector<8x32xf32>
    tpu.vector_store %arg5[%c0_10, %c0_11], %21 {strides = array<i32>} : memref<8x32xf32, #tpu.memory_space<vmem>>, vector<8x32xf32>,
    return
  }
  func.func @transform_0(%arg0: i32, %arg1: i32) -> (i32, i32) {
    %c0_i32 = arith.constant 0 : i32
    %c0_i32_0 = arith.constant 0 : i32
    return %arg0, %c0_i32 : i32, i32
  }
  func.func @transform_1(%arg0: i32, %arg1: i32) -> (i32, i32) {
    %c0_i32 = arith.constant 0 : i32
    %c0_i32_0 = arith.constant 0 : i32
    return %c0_i32, %arg1 : i32, i32
  }
  func.func @transform_2(%arg0: i32, %arg1: i32) -> (i32, i32) {
    %c0_i32 = arith.constant 0 : i32
    %c0_i32_0 = arith.constant 0 : i32
    return %c0_i32, %arg1 : i32, i32
  }
  func.func @transform_3(%arg0: i32, %arg1: i32) -> (i32, i32) {
    %c0_i32 = arith.constant 0 : i32
    return %arg0, %arg1 : i32, i32
  }
}

</mosaic_0001>

<llo_original>
// kernel: tpu_custom_call.1
$region0: #{tpu_custom_call.1}
  #allocation0 [shape = 'u32[]', space=smem, size = 0x4, offset = 0x4, fixed_abs, tag = 'smem constant byte address 0x4 - core index']
  #allocation1 [shape = 'u32[144,128]{1,0:T(1,128)}', space=vmem, size = 0x12000, scoped, tag = 'internal scratch']
  %s0 = inlined_call_operand.hbm [shape: f32[16,32], index: 0, kind: input, shape index: {}]
  %s1 = inlined_call_operand.hbm [shape: f32[32,32], index: 1, kind: input, shape index: {}]
  %s2 = inlined_call_operand.vmem [shape: f32[1,32], index: 2, kind: input, shape index: {}]
  %s3 = inlined_call_operand.hbm [shape: f32[16,32], index: 3, kind: output, shape index: {}]
  %s4 = sld [smem:[#allocation0]]
  $region53: #{tpu_custom_call.1} parent=0
    _
  %s6 = ssub.s32 1, %s4
  %s7 = scalar_select 0, %s6, %s4
  $region1: #{tpu_custom_call.1} parent=0
    #allocation2 [shape = 'u8[8192]{0}', space=vmem, size = 0x2000, scoped, tag = 'input window, operand 0']
    #allocation3 [shape = 's32[2]{0}', space=sflag, size = 0x8, scoped, tag = 'scoped memory for tpu_custom_call.1']
    #allocation4 [shape = 's32[2]{0}', space=sflag, size = 0x8, scoped, tag = 'scoped memory for tpu_custom_call.1']
    #allocation5 [shape = 'u8[16384]{0}', space=vmem, size = 0x4000, scoped, tag = 'input window, operand 1, single buffered']
    #allocation6 [shape = 's32[1]{0}', space=sflag, size = 0x4, scoped, tag = 'scoped memory for tpu_custom_call.1']
    #allocation7 [shape = 'u8[8192]{0}', space=vmem, size = 0x2000, scoped, tag = 'output window, operand 0']
    %8 = vsyncpa [#allocation3], 0
    %s9 = scalar_lea.sflag [#allocation3], 1
    %10 = vsyncpa %s9, 0
    %11 = vsyncpa [#allocation6], 0
    %12 = vsyncpa [#allocation4], 0
    %s13 = scalar_lea.sflag [#allocation4], 1
    %14 = vsyncpa %s13, 0
    loop: start=0, step=1, limit=4
    $region2: #{tpu_custom_call.1} parent=1 // loop_pre_header
      _
    $region3: #{tpu_custom_call.1} parent=1 // loop_header
      %s16 = sphi 0, %s20
      %p17 = scmp.ge.s32.totalorder %s16, 4
      %s23 = sphi 0, %s35
      %s24 = sphi 0, %s31
      %s25 = sphi 0, %s23
      %s26 = sphi 0, %s24
      %s27 = sphi 0, %s25
      %s28 = sphi 0, %s26
      %s38 = sphi 0, %s40
      %s41 = sphi 0, %s38
      %s42 = sphi 0, %s41
      %s58 = sphi 0, %s42
      %s64 = sphi 0, %s66
      %s67 = sphi 0, %s64
      %s68 = sphi 0, %s67
      %s84 = sphi 0, %s68
      %s90 = sphi 0, %s92
      %s93 = sphi 0, %s90
      %s94 = sphi 0, %s93
      %s110 = sphi 0, %s94
      %s118 = sphi 0, %s120
      %s121 = sphi 0, %s118
      %s122 = sphi 0, %s121
      %s138 = sphi 0, %s122
    $region4: #{tpu_custom_call.1} parent=1 // loop_header_branch
      %19 = sbr.rel (%p17) target = $region8
    $region5: #{tpu_custom_call.1} parent=1 // loop_body
      %s21 = ssub.s32 %s16, 1
      %s22 = ssub.s32 %s16, 2
      %s29 = sadd.s32 1, %s24
      %p30 = scmp.ge.s32.totalorder %s29, 1
      %s31 = scalar_select %p30, 0, %s29
      %s32 = sadd.s32 1, %s23
      %s33 = scalar_select %p30, %s32, %s23
      %p34 = scmp.ge.s32.totalorder %s33, 2
      %s35 = scalar_select %p34, 0, %s33
      %s36 = ssub.s32 %s23, %s35
      %p37 = scmp.eq.s32.totalorder %s36, 0
      %s39 = sadd.s32 %s38, 1
      %s40 = scalar_select %p37, %s38, %s39
      %p43 = pneg %p37
      %p44 = scmp.eq.s32.totalorder %s16, 1
      %p45 = por %p43, %p44
      %p46 = scmp.ne.s32.totalorder %s38, %s41
      %p47 = scmp.eq.s32.totalorder %s16, 0
      %p48 = por %p46, %p47
      %p49 = scmp.ne.s32.totalorder %s38, %s41
      %p50 = scmp.eq.s32.totalorder %s21, 1
      %p51 = por %p49, %p50
      %p52 = scmp.ne.s32.totalorder %s41, %s42
      %p53 = scmp.eq.s32.totalorder %s21, 0
      %p54 = por %p52, %p53
      %p55 = scmp.ne.s32.totalorder %s41, %s42
      %p56 = scmp.eq.s32.totalorder %s22, 1
      %p57 = por %p55, %p56
      %p59 = scmp.ne.s32.totalorder %s42, %s58
      %p60 = scmp.eq.s32.totalorder %s22, 0
      %p61 = por %p59, %p60
      %s62 = ssub.s32 %s24, %s31
      %p63 = scmp.eq.s32.totalorder %s62, 0
      %s65 = sadd.s32 %s64, 1
      %s66 = scalar_select %p63, %s64, %s65
      %p69 = pneg %p63
      %p70 = scmp.eq.s32.totalorder %s16, 1
      %p71 = por %p69, %p70
      %p72 = scmp.ne.s32.totalorder %s64, %s67
      %p73 = scmp.eq.s32.totalorder %s16, 0
      %p74 = por %p72, %p73
      %p75 = scmp.ne.s32.totalorder %s64, %s67
      %p76 = scmp.eq.s32.totalorder %s21, 1
      %p77 = por %p75, %p76
      %p78 = scmp.ne.s32.totalorder %s67, %s68
      %p79 = scmp.eq.s32.totalorder %s21, 0
      %p80 = por %p78, %p79
      %p81 = scmp.ne.s32.totalorder %s67, %s68
      %p82 = scmp.eq.s32.totalorder %s22, 1
      %p83 = por %p81, %p82
      %p85 = scmp.ne.s32.totalorder %s68, %s84
      %p86 = scmp.eq.s32.totalorder %s22, 0
      %p87 = por %p85, %p86
      %s88 = ssub.s32 %s24, %s31
      %p89 = scmp.eq.s32.totalorder %s88, 0
      %s91 = sadd.s32 %s90, 1
      %s92 = scalar_select %p89, %s90, %s91
      %p95 = pneg %p89
      %p96 = scmp.eq.s32.totalorder %s16, 1
      %p97 = por %p95, %p96
      %p98 = scmp.ne.s32.totalorder %s90, %s93
      %p99 = scmp.eq.s32.totalorder %s16, 0
      %p100 = por %p98, %p99
      %p101 = scmp.ne.s32.totalorder %s90, %s93
      %p102 = scmp.eq.s32.totalorder %s21, 1
      %p103 = por %p101, %p102
      %p104 = scmp.ne.s32.totalorder %s93, %s94
      %p105 = scmp.eq.s32.totalorder %s21, 0
      %p106 = por %p104, %p105
      %p107 = scmp.ne.s32.totalorder %s93, %s94
      %p108 = scmp.eq.s32.totalorder %s22, 1
      %p109 = por %p107, %p108
      %p111 = scmp.ne.s32.totalorder %s94, %s110
      %p112 = scmp.eq.s32.totalorder %s22, 0
      %p113 = por %p111, %p112
      %s114 = ssub.s32 %s23, %s35
      %s115 = ssub.s32 %s24, %s31
      %s116 = sor.u32 %s114, %s115
      %p117 = scmp.eq.s32.totalorder %s116, 0
      %s119 = sadd.s32 %s118, 1
      %s120 = scalar_select %p117, %s118, %s119
      %p123 = pneg %p117
      %p124 = scmp.eq.s32.totalorder %s16, 1
      %p125 = por %p123, %p124
      %p126 = scmp.ne.s32.totalorder %s118, %s121
      %p127 = scmp.eq.s32.totalorder %s16, 0
      %p128 = por %p126, %p127
      %p129 = scmp.ne.s32.totalorder %s118, %s121
      %p130 = scmp.eq.s32.totalorder %s21, 1
      %p131 = por %p129, %p130
      %p132 = scmp.ne.s32.totalorder %s121, %s122
      %p133 = scmp.eq.s32.totalorder %s21, 0
      %p134 = por %p132, %p133
      %p135 = scmp.ne.s32.totalorder %s121, %s122
      %p136 = scmp.eq.s32.totalorder %s22, 1
      %p137 = por %p135, %p136
      %p139 = scmp.ne.s32.totalorder %s122, %s138
      %p140 = scmp.eq.s32.totalorder %s22, 0
      %p141 = por %p139, %p140
      %p142 = scmp.le.s32.totalorder 1, %s16
      %p143 = scmp.lt.s32.totalorder %s16, 3
      %p144 = pnand %p142, %p143
      %p145 = pneg %p144
      // Predicated region
      $region9: #{tpu_custom_call.1} parent=5 // pred_check
        _
      $region10: #{tpu_custom_call.1} parent=5 // pred_check_branch
        %147 = sbr.rel (%p144) target = $region12
      $region11: #{tpu_custom_call.1} parent=5 // pred_region
        %s148 = ssub.s32 %s16, 1
        // Predicated region
        $region13: #{tpu_custom_call.1} parent=11 // pred_check
          %p149 = pneg %p80
        $region14: #{tpu_custom_call.1} parent=11 // pred_check_branch
          %151 = sbr.rel (%p149) target = $region16
        $region15: #{tpu_custom_call.1} parent=11 // pred_region
          %s153 = ssub.s32 512, 512
          %154 = vsyncadd [#allocation6], %s153
          %s155 = smul.addr %s26, 128
          %s156 = scalar_lea.hbm %s1, %s155
          %s157 = sshll.u32 [#allocation5], 4
          %s158 = int_to_ptr.vmem [resolvable:$true] %s157
          %163 = dma.hbm_to_vmem [thread:$0]  %s156, 512, %s158, [#allocation6], 128, 128, 8
        $region16: #{tpu_custom_call.1} parent=11 // pred_fallthru
          _
        // Predicated region
        $region17: #{tpu_custom_call.1} parent=11 // pred_check
          %p164 = pneg %p106
        $region18: #{tpu_custom_call.1} parent=11 // pred_check_branch
          %166 = sbr.rel (%p164) target = $region20
        $region19: #{tpu_custom_call.1} parent=11 // pred_region
          %p167 = scmp.lt.s32.totalorder %s26, 0
          %s168 = scalar_select %p167, %s26, 0
          %s169 = scalar_lea.vmem %s2, %s168
        $region20: #{tpu_custom_call.1} parent=11 // pred_fallthru
          _
      $region12: #{tpu_custom_call.1} parent=5 // pred_fallthru
        _
      %p170 = scmp.lt.s32.totalorder %s16, 2
      // Predicated region
      $region21: #{tpu_custom_call.1} parent=5 // pred_check
        %p171 = pneg %p170
      $region22: #{tpu_custom_call.1} parent=5 // pred_check_branch
        %173 = sbr.rel (%p171) target = $region24
      $region23: #{tpu_custom_call.1} parent=5 // pred_region
        // Predicated region
        $region25: #{tpu_custom_call.1} parent=23 // pred_check
          %p174 = pneg %p48
        $region26: #{tpu_custom_call.1} parent=23 // pred_check_branch
          %176 = sbr.rel (%p174) target = $region28
        $region27: #{tpu_custom_call.1} parent=23 // pred_region
          %s177 = sand.u32 %s38, 1
          %s178 = scalar_lea.sflag [#allocation3], %s177
          %s179 = sand.u32 %s38, 1
          %s180 = smul.addr %s179, 8
          %s181 = scalar_lea.vmem [#allocation2], %s180
          %s183 = ssub.s32 128, 128
          %184 = vsyncadd %s178, %s183
          %s185 = smul.addr %s23, 128
          %s186 = scalar_lea.hbm %s0, %s185
          %s188 = sshll.u32 %s181, 4
          %s189 = int_to_ptr.vmem [resolvable:$true] %s188
          %191 = dma.hbm_to_vmem [thread:$0]  %s186, 128, %s189, %s178
        $region28: #{tpu_custom_call.1} parent=23 // pred_fallthru
          _
      $region24: #{tpu_custom_call.1} parent=5 // pred_fallthru
        _
      %p192 = scmp.le.s32.totalorder 1, %s16
      %p193 = scmp.lt.s32.totalorder %s16, 3
      %p194 = pnand %p192, %p193
      %p195 = pneg %p194
      // Predicated region
      $region29: #{tpu_custom_call.1} parent=5 // pred_check
        _
      $region30: #{tpu_custom_call.1} parent=5 // pred_check_branch
        %197 = sbr.rel (%p194) target = $region32
      $region31: #{tpu_custom_call.1} parent=5 // pred_region
        %s198 = ssub.s32 %s16, 1
        %s199 = sand.u32 %s41, 1
        %s200 = scalar_lea.sflag [#allocation3], %s199
        %s201 = sand.u32 %s41, 1
        %s202 = smul.addr %s201, 8
        %s203 = scalar_lea.vmem [#allocation2], %s202
        // Predicated region
        $region33: #{tpu_custom_call.1} parent=31 // pred_check
          %p204 = pneg %p54
        $region34: #{tpu_custom_call.1} parent=31 // pred_check_branch
          %206 = sbr.rel (%p204) target = $region36
        $region35: #{tpu_custom_call.1} parent=31 // pred_region
          %207 = dma.done %s200, 128
        $region36: #{tpu_custom_call.1} parent=31 // pred_fallthru
          _
        // Predicated region
        $region37: #{tpu_custom_call.1} parent=31 // pred_check
          %p208 = pneg %p80
        $region38: #{tpu_custom_call.1} parent=31 // pred_check_branch
          %210 = sbr.rel (%p208) target = $region40
        $region39: #{tpu_custom_call.1} parent=31 // pred_region
          %211 = dma.done [#allocation6], 512
        $region40: #{tpu_custom_call.1} parent=31 // pred_fallthru
          _
        %s212 = sand.u32 %s41, 1
        %s213 = scalar_lea.sflag [#allocation3], %s212
        %s214 = sand.u32 %s41, 1
        %s215 = smul.addr %s214, 8
        %s216 = scalar_lea.vmem [#allocation2], %s215
        %p217 = pneg %p54
        %p218 = pneg %p51
        %p219 = pneg %p80
        %p220 = pneg %p77
        %p221 = scmp.lt.s32.totalorder %s26, 0
        %s222 = scalar_select %p221, %s26, 0
        %s223 = scalar_lea.vmem %s2, %s222
        %p224 = pneg %p106
        %p225 = pneg %p103
        %p226 = pneg %p134
        %p227 = pneg %p131
        %s228 = sand.u32 %s121, 1
        %s229 = scalar_lea.sflag [#allocation4], %s228
        %s230 = sand.u32 %s121, 1
        %s231 = smul.addr %s230, 8
        %s232 = scalar_lea.vmem [#allocation7], %s231
        %p233 = scmp.lt.s32.totalorder %s26, 0
        %s234 = scalar_select %p233, %s26, 0
        %s235 = scalar_lea.vmem %s2, %s234
        %v236 = vld [vmem:[%s203] sm:$0xff]
        %vm237 = vcmask 261120
        %v238 = vsel %vm237, %v236, 0.0
        %239 = vadd.xlane.f32.xlu0 %v238
        %v240 = vpop.xlane.xlu0 %239
        %v241 = vrcp.pop 32.0
        %v242 = vmul.f32 %v240, %v241
        %v243 = vsub.f32 %v236, %v242
        %v244 = vmul.f32 %v243, %v243
        %v245 = vsel %vm237, %v244, 0.0
        %246 = vadd.xlane.f32.xlu0 %v245
        %v247 = vpop.xlane.xlu0 %246
        %v248 = vmul.f32 %v247, %v241
        %v249 = vadd.f32 %v248, 1e-05
        %v250 = vrsqrt.pop %v249
        %v251 = vmul.f32 %v243, %v250
        %v252 = vld [vmem:[#allocation5] sm:$0xff]
        %v253 = vld [vmem:[#allocation5 + $0x8] sm:$0xff]
        %v254 = vld [vmem:[#allocation5 + $0x10] sm:$0xff]
        %v255 = vld [vmem:[#allocation5 + $0x18] sm:$0xff]
        %v256 = vld [vmem:[%s235] sm:$0x1]
        %v258 = vlaneseq
        %v259 = vshrl.u32 %v258, 7
        %v260 = vsub.s32 0, %v259
        %v261 = vrot.slane %v256, %v260
        %v264 = vsel %vm237, %v251, 0
        %266 = vmatprep.subr.mxu0 0.0
        %267 = vmatpush1.msra.mxu0 %v252
        %268 = vmatprep.subr.mxu0 0.0
        %269 = vmatpush1.msra.mxu0 %v253
        %270 = vmatprep.subr.mxu0 0.0
        %271 = vmatpush1.msra.mxu0 %v254
        %272 = vmatprep.subr.mxu0 0.0
        %273 = vmatpush1.msra.mxu0 %v255
        %274 = vmatprep.subr.mxu0 0.0
        %275 = vmatpush1.msra.mxu0 0.0
        %276 = vmatprep.subr.mxu0 0.0
        %277 = vmatpush1.msra.mxu0 0.0
        %278 = vmatprep.subr.mxu0 0.0
        %279 = vmatpush1.msra.mxu0 0.0
        %280 = vmatprep.subr.mxu0 0.0
        %281 = vmatpush1.msra.mxu0 0.0
        %282 = vmatprep.subr.mxu0 0.0
        %283 = vmatpush1.msra.mxu0 0.0
        %284 = vmatprep.subr.mxu0 0.0
        %285 = vmatpush1.msra.mxu0 0.0
        %286 = vmatprep.subr.mxu0 0.0
        %287 = vmatpush1.msra.mxu0 0.0
        %288 = vmatprep.subr.mxu0 0.0
        %289 = vmatpush1.msra.mxu0 0.0
        %290 = vmatprep.subr.mxu0 0.0
        %291 = vmatpush1.msra.mxu0 0.0
        %292 = vmatprep.subr.mxu0 0.0
        %293 = vmatpush1.msra.mxu0 0.0
        %294 = vmatprep.subr.mxu0 0.0
        %295 = vmatpush1.msra.mxu0 0.0
        %296 = vmatprep.subr.mxu0 0.0
        %297 = vmatpush1.msra.mxu0 0.0
        %298 = vmatprep.subr.mxu0 0.0
        %299 = vmatpush1.msra.mxu0 0.0
        %300 = vmatprep.subr.mxu0 0.0
        %301 = vmatpush1.msra.mxu0 0.0
        %302 = vmatprep.subr.mxu0 0.0
        %303 = vmatpush1.msra.mxu0 0.0
        %304 = vmatprep.subr.mxu0 0.0
        %305 = vmatpush1.msra.mxu0 0.0
        %306 = vmatprep.subr.mxu0 0.0
        %307 = vmatpush1.msra.mxu0 0.0
        %308 = vmatprep.subr.mxu0 0.0
        %309 = vmatpush1.msra.mxu0 0.0
        %310 = vmatprep.subr.mxu0 0.0
        %311 = vmatpush1.msra.mxu0 0.0
        %312 = vmatprep.subr.mxu0 0.0
        %313 = vmatpush1.msra.mxu0 0.0
        %314 = vmatprep.subr.mxu0 0.0
        %315 = vmatpush1.msra.mxu0 0.0
        %316 = vmatprep.subr.mxu0 0.0
        %317 = vmatpush1.msra.mxu0 0.0
        %318 = vmatprep.subr.mxu0 0.0
        %319 = vmatpush1.msra.mxu0 0.0
        %320 = vmatprep.subr.mxu0 0.0
        %321 = vmatpush1.msra.mxu0 0.0
        %322 = vmatprep.subr.mxu0 0.0
        %323 = vmatpush1.msra.mxu0 0.0
        %324 = vmatprep.subr.mxu0 0.0
        %325 = vmatpush1.msra.mxu0 0.0
        %326 = vmatprep.subr.mxu0 0.0
        %327 = vmatpush1.msra.mxu0 0.0
        %328 = vmatprep.subr.mxu0 0.0
        %329 = vmatpush1.msra.mxu0 0.0
        %330 = vmatprep.mubr.f32.mxu0 0.0
        %331 = vmatmul.mubr.f32.gmra.mrb[0].mxu0 %v264
        %v332 = vpop.f32.mrb[0].mxu0
        %v333 = vadd.f32 %v261, %v332
        %v334 = vpop.f32.mrb[0].mxu0
        %335 = vdwg.mxu0
        %336 = vst.msk [vmem:[%s232] sm:$0xff] %vm237, %v333
        %s337 = sand.u32 %s121, 1
        %s338 = scalar_lea.sflag [#allocation4], %s337
        %s339 = sand.u32 %s121, 1
        %s340 = smul.addr %s339, 8
        %s341 = scalar_lea.vmem [#allocation7], %s340
        // Predicated region
        $region41: #{tpu_custom_call.1} parent=31 // pred_check
          %p342 = pneg %p131
        $region42: #{tpu_custom_call.1} parent=31 // pred_check_branch
          %344 = sbr.rel (%p342) target = $region44
        $region43: #{tpu_custom_call.1} parent=31 // pred_region
          %s346 = ssub.s32 128, 128
          %347 = vsyncadd %s338, %s346
          %s348 = sadd.s32 %s26, %s25
          %s349 = smul.addr %s348, 128
          %s350 = scalar_lea.hbm %s3, %s349
          %s352 = sshll.u32 %s341, 4
          %s353 = int_to_ptr.vmem [resolvable:$true] %s352
          %355 = dma.vmem_to_hbm [thread:$0]  %s353, 128, %s350, %s338
        $region44: #{tpu_custom_call.1} parent=31 // pred_fallthru
          _
      $region32: #{tpu_custom_call.1} parent=5 // pred_fallthru
        _
      %p356 = scmp.le.s32.totalorder 2, %s16
      // Predicated region
      $region45: #{tpu_custom_call.1} parent=5 // pred_check
        %p357 = pneg %p356
      $region46: #{tpu_custom_call.1} parent=5 // pred_check_branch
        %359 = sbr.rel (%p357) target = $region48
      $region47: #{tpu_custom_call.1} parent=5 // pred_region
        %s360 = ssub.s32 %s16, 2
        // Predicated region
        $region49: #{tpu_custom_call.1} parent=47 // pred_check
          %p361 = pneg %p137
        $region50: #{tpu_custom_call.1} parent=47 // pred_check_branch
          %363 = sbr.rel (%p361) target = $region52
        $region51: #{tpu_custom_call.1} parent=47 // pred_region
          %s364 = sand.u32 %s122, 1
          %s365 = scalar_lea.sflag [#allocation4], %s364
          %s366 = sand.u32 %s122, 1
          %s367 = smul.addr %s366, 8
          %s368 = scalar_lea.vmem [#allocation7], %s367
          %369 = dma.done %s365, 128
        $region52: #{tpu_custom_call.1} parent=47 // pred_fallthru
          _
      $region48: #{tpu_custom_call.1} parent=5 // pred_fallthru
        _
    $region6: #{tpu_custom_call.1} parent=1 // loop_footer
      %s20 = sadd.s32 1, %s16
    $region7: #{tpu_custom_call.1} parent=1 // loop_footer_branch
      %15 = sbr.rel target = $region3
    $region8: #{tpu_custom_call.1} parent=1 // loop_exit
      _
    %370 = vsyncpa [#allocation3], 1
    %s371 = scalar_lea.sflag [#allocation3], 1
    %372 = vsyncpa %s371, 1
    %373 = vsyncpa [#allocation6], 1
    %374 = vsyncpa [#allocation4], 1
    %s375 = scalar_lea.sflag [#allocation4], 1
    %376 = vsyncpa %s375, 1

// kernel: tpu_custom_call.1
$region0: #{tpu_custom_call.1}
  #allocation0 [shape = 'u32[]', space=smem, size = 0x4, offset = 0x4, fixed_abs, tag = 'smem constant byte address 0x4 - core index']
  #allocation1 [shape = 'u32[144,128]{1,0:T(1,128)}', space=vmem, size = 0x12000, scoped, tag = 'internal scratch']
  %s0 = inlined_call_operand.hbm [shape: f32[16,32], index: 0, kind: input, shape index: {}]
  %s1 = inlined_call_operand.hbm [shape: f32[32,32], index: 1, kind: input, shape index: {}]
  %s2 = inlined_call_operand.vmem [shape: f32[1,32], index: 2, kind: input, shape index: {}]
  %s3 = inlined_call_operand.hbm [shape: f32[16,32], index: 3, kind: output, shape index: {}]
  %s4 = sld [smem:[#allocation0]]
  $region53: #{tpu_custom_call.1} parent=0
    _
  %s6 = ssub.s32 1, %s4
  %s7 = scalar_select 0, %s6, %s4
  $region1: #{tpu_custom_call.1} parent=0
    #allocation2 [shape = 'u8[8192]{0}', space=vmem, size = 0x2000, scoped, tag = 'input window, operand 0']
    #allocation3 [shape = 's32[2]{0}', space=sflag, size = 0x8, scoped, tag = 'scoped memory for tpu_custom_call.1']
    #allocation4 [shape = 's32[2]{0}', space=sflag, size = 0x8, scoped, tag = 'scoped memory for tpu_custom_call.1']
    #allocation5 [shape = 'u8[16384]{0}', space=vmem, size = 0x4000, scoped, tag = 'input window, operand 1, single buffered']
    #allocation6 [shape = 's32[1]{0}', space=sflag, size = 0x4, scoped, tag = 'scoped memory for tpu_custom_call.1']
    #allocation7 [shape = 'u8[8192]{0}', space=vmem, size = 0x2000, scoped, tag = 'output window, operand 0']
    %8 = vsyncpa [#allocation3], 0
    %s9 = scalar_lea.sflag [#allocation3], 1
    %10 = vsyncpa %s9, 0
    %11 = vsyncpa [#allocation6], 0
    %12 = vsyncpa [#allocation4], 0
    %s13 = scalar_lea.sflag [#allocation4], 1
    %14 = vsyncpa %s13, 0
    loop: start=0, step=1, limit=4
    $region2: #{tpu_custom_call.1} parent=1 // loop_pre_header
      _
    $region3: #{tpu_custom_call.1} parent=1 // loop_header
      %s16 = sphi 0, %s20
      %p17 = scmp.ge.s32.totalorder %s16, 4
      %s23 = sphi 0, %s35
      %s24 = sphi 0, %s31
      %s25 = sphi 0, %s23
      %s26 = sphi 0, %s24
      %s27 = sphi 0, %s25
      %s28 = sphi 0, %s26
      %s38 = sphi 0, %s40
      %s41 = sphi 0, %s38
      %s42 = sphi 0, %s41
      %s58 = sphi 0, %s42
      %s64 = sphi 0, %s66
      %s67 = sphi 0, %s64
      %s68 = sphi 0, %s67
      %s84 = sphi 0, %s68
      %s90 = sphi 0, %s92
      %s93 = sphi 0, %s90
      %s94 = sphi 0, %s93
      %s110 = sphi 0, %s94
      %s118 = sphi 0, %s120
      %s121 = sphi 0, %s118
      %s122 = sphi 0, %s121
      %s138 = sphi 0, %s122
    $region4: #{tpu_custom_call.1} parent=1 // loop_header_branch
      %19 = sbr.rel (%p17) target = $region8
    $region5: #{tpu_custom_call.1} parent=1 // loop_body
      %s21 = ssub.s32 %s16, 1
      %s22 = ssub.s32 %s16, 2
      %s29 = sadd.s32 1, %s24
      %p30 = scmp.ge.s32.totalorder %s29, 1
      %s31 = scalar_select %p30, 0, %s29
      %s32 = sadd.s32 1, %s23
      %s33 = scalar_select %p30, %s32, %s23
      %p34 = scmp.ge.s32.totalorder %s33, 2
      %s35 = scalar_select %p34, 0, %s33
      %s36 = ssub.s32 %s23, %s35
      %p37 = scmp.eq.s32.totalorder %s36, 0
      %s39 = sadd.s32 %s38, 1
      %s40 = scalar_select %p37, %s38, %s39
      %p43 = pneg %p37
      %p44 = scmp.eq.s32.totalorder %s16, 1
      %p45 = por %p43, %p44
      %p46 = scmp.ne.s32.totalorder %s38, %s41
      %p47 = scmp.eq.s32.totalorder %s16, 0
      %p48 = por %p46, %p47
      %p49 = scmp.ne.s32.totalorder %s38, %s41
      %p50 = scmp.eq.s32.totalorder %s21, 1
      %p51 = por %p49, %p50
      %p52 = scmp.ne.s32.totalorder %s41, %s42
      %p53 = scmp.eq.s32.totalorder %s21, 0
      %p54 = por %p52, %p53
      %p55 = scmp.ne.s32.totalorder %s41, %s42
      %p56 = scmp.eq.s32.totalorder %s22, 1
      %p57 = por %p55, %p56
      %p59 = scmp.ne.s32.totalorder %s42, %s58
      %p60 = scmp.eq.s32.totalorder %s22, 0
      %p61 = por %p59, %p60
      %s62 = ssub.s32 %s24, %s31
      %p63 = scmp.eq.s32.totalorder %s62, 0
      %s65 = sadd.s32 %s64, 1
      %s66 = scalar_select %p63, %s64, %s65
      %p69 = pneg %p63
      %p70 = scmp.eq.s32.totalorder %s16, 1
      %p71 = por %p69, %p70
      %p72 = scmp.ne.s32.totalorder %s64, %s67
      %p73 = scmp.eq.s32.totalorder %s16, 0
      %p74 = por %p72, %p73
      %p75 = scmp.ne.s32.totalorder %s64, %s67
      %p76 = scmp.eq.s32.totalorder %s21, 1
      %p77 = por %p75, %p76
      %p78 = scmp.ne.s32.totalorder %s67, %s68
      %p79 = scmp.eq.s32.totalorder %s21, 0
      %p80 = por %p78, %p79
      %p81 = scmp.ne.s32.totalorder %s67, %s68
      %p82 = scmp.eq.s32.totalorder %s22, 1
      %p83 = por %p81, %p82
      %p85 = scmp.ne.s32.totalorder %s68, %s84
      %p86 = scmp.eq.s32.totalorder %s22, 0
      %p87 = por %p85, %p86
      %s88 = ssub.s32 %s24, %s31
      %p89 = scmp.eq.s32.totalorder %s88, 0
      %s91 = sadd.s32 %s90, 1
      %s92 = scalar_select %p89, %s90, %s91
      %p95 = pneg %p89
      %p96 = scmp.eq.s32.totalorder %s16, 1
      %p97 = por %p95, %p96
      %p98 = scmp.ne.s32.totalorder %s90, %s93
      %p99 = scmp.eq.s32.totalorder %s16, 0
      %p100 = por %p98, %p99
      %p101 = scmp.ne.s32.totalorder %s90, %s93
      %p102 = scmp.eq.s32.totalorder %s21, 1
      %p103 = por %p101, %p102
      %p104 = scmp.ne.s32.totalorder %s93, %s94
      %p105 = scmp.eq.s32.totalorder %s21, 0
      %p106 = por %p104, %p105
      %p107 = scmp.ne.s32.totalorder %s93, %s94
      %p108 = scmp.eq.s32.totalorder %s22, 1
      %p109 = por %p107, %p108
      %p111 = scmp.ne.s32.totalorder %s94, %s110
      %p112 = scmp.eq.s32.totalorder %s22, 0
      %p113 = por %p111, %p112
      %s114 = ssub.s32 %s23, %s35
      %s115 = ssub.s32 %s24, %s31
      %s116 = sor.u32 %s114, %s115
      %p117 = scmp.eq.s32.totalorder %s116, 0
      %s119 = sadd.s32 %s118, 1
      %s120 = scalar_select %p117, %s118, %s119
      %p123 = pneg %p117
      %p124 = scmp.eq.s32.totalorder %s16, 1
      %p125 = por %p123, %p124
      %p126 = scmp.ne.s32.totalorder %s118, %s121
      %p127 = scmp.eq.s32.totalorder %s16, 0
      %p128 = por %p126, %p127
      %p129 = scmp.ne.s32.totalorder %s118, %s121
      %p130 = scmp.eq.s32.totalorder %s21, 1
      %p131 = por %p129, %p130
      %p132 = scmp.ne.s32.totalorder %s121, %s122
      %p133 = scmp.eq.s32.totalorder %s21, 0
      %p134 = por %p132, %p133
      %p135 = scmp.ne.s32.totalorder %s121, %s122
      %p136 = scmp.eq.s32.totalorder %s22, 1
      %p137 = por %p135, %p136
      %p139 = scmp.ne.s32.totalorder %s122, %s138
      %p140 = scmp.eq.s32.totalorder %s22, 0
      %p141 = por %p139, %p140
      %p142 = scmp.le.s32.totalorder 1, %s16
      %p143 = scmp.lt.s32.totalorder %s16, 3
      %p144 = pnand %p142, %p143
      %p145 = pneg %p144
      // Predicated region
      $region9: #{tpu_custom_call.1} parent=5 // pred_check
        _
      $region10: #{tpu_custom_call.1} parent=5 // pred_check_branch
        %147 = sbr.rel (%p144) target = $region12
      $region11: #{tpu_custom_call.1} parent=5 // pred_region
        %s148 = ssub.s32 %s16, 1
        // Predicated region
        $region13: #{tpu_custom_call.1} parent=11 // pred_check
          %p149 = pneg %p80
        $region14: #{tpu_custom_call.1} parent=11 // pred_check_branch
          %151 = sbr.rel (%p149) target = $region16
        $region15: #{tpu_custom_call.1} parent=11 // pred_region
          %s153 = ssub.s32 512, 512
          %154 = vsyncadd [#allocation6], %s153
          %s155 = smul.addr %s26, 128
          %s156 = scalar_lea.hbm %s1, %s155
          %s157 = sshll.u32 [#allocation5], 4
          %s158 = int_to_ptr.vmem [resolvable:$true] %s157
          %163 = dma.hbm_to_vmem [thread:$0]  %s156, 512, %s158, [#allocation6], 128, 128, 8
        $region16: #{tpu_custom_call.1} parent=11 // pred_fallthru
          _
        // Predicated region
        $region17: #{tpu_custom_call.1} parent=11 // pred_check
          %p164 = pneg %p106
        $region18: #{tpu_custom_call.1} parent=11 // pred_check_branch
          %166 = sbr.rel (%p164) target = $region20
        $region19: #{tpu_custom_call.1} parent=11 // pred_region
          %p167 = scmp.lt.s32.totalorder %s26, 0
          %s168 = scalar_select %p167, %s26, 0
          %s169 = scalar_lea.vmem %s2, %s168
        $region20: #{tpu_custom_call.1} parent=11 // pred_fallthru
          _
      $region12: #{tpu_custom_call.1} parent=5 // pred_fallthru
        _
      %p170 = scmp.lt.s32.totalorder %s16, 2
      // Predicated region
      $region21: #{tpu_custom_call.1} parent=5 // pred_check
        %p171 = pneg %p170
      $region22: #{tpu_custom_call.1} parent=5 // pred_check_branch
        %173 = sbr.rel (%p171) target = $region24
      $region23: #{tpu_custom_call.1} parent=5 // pred_region
        // Predicated region
        $region25: #{tpu_custom_call.1} parent=23 // pred_check
          %p174 = pneg %p48
        $region26: #{tpu_custom_call.1} parent=23 // pred_check_branch
          %176 = sbr.rel (%p174) target = $region28
        $region27: #{tpu_custom_call.1} parent=23 // pred_region
          %s177 = sand.u32 %s38, 1
          %s178 = scalar_lea.sflag [#allocation3], %s177
          %s179 = sand.u32 %s38, 1
          %s180 = smul.addr %s179, 8
          %s181 = scalar_lea.vmem [#allocation2], %s180
          %s183 = ssub.s32 128, 128
          %184 = vsyncadd %s178, %s183
          %s185 = smul.addr %s23, 128
          %s186 = scalar_lea.hbm %s0, %s185
          %s188 = sshll.u32 %s181, 4
          %s189 = int_to_ptr.vmem [resolvable:$true] %s188
          %191 = dma.hbm_to_vmem [thread:$0]  %s186, 128, %s189, %s178
        $region28: #{tpu_custom_call.1} parent=23 // pred_fallthru
          _
      $region24: #{tpu_custom_call.1} parent=5 // pred_fallthru
        _
      %p192 = scmp.le.s32.totalorder 1, %s16
      %p193 = scmp.lt.s32.totalorder %s16, 3
      %p194 = pnand %p192, %p193
      %p195 = pneg %p194
      // Predicated region
      $region29: #{tpu_custom_call.1} parent=5 // pred_check
        _
      $region30: #{tpu_custom_call.1} parent=5 // pred_check_branch
        %197 = sbr.rel (%p194) target = $region32
      $region31: #{tpu_custom_call.1} parent=5 // pred_region
        %s198 = ssub.s32 %s16, 1
        %s199 = sand.u32 %s41, 1
        %s200 = scalar_lea.sflag [#allocation3], %s199
        %s201 = sand.u32 %s41, 1
        %s202 = smul.addr %s201, 8
        %s203 = scalar_lea.vmem [#allocation2], %s202
        // Predicated region
        $region33: #{tpu_custom_call.1} parent=31 // pred_check
          %p204 = pneg %p54
        $region34: #{tpu_custom_call.1} parent=31 // pred_check_branch
          %206 = sbr.rel (%p204) target = $region36
        $region35: #{tpu_custom_call.1} parent=31 // pred_region
          %207 = dma.done %s200, 128
        $region36: #{tpu_custom_call.1} parent=31 // pred_fallthru
          _
        // Predicated region
        $region37: #{tpu_custom_call.1} parent=31 // pred_check
          %p208 = pneg %p80
        $region38: #{tpu_custom_call.1} parent=31 // pred_check_branch
          %210 = sbr.rel (%p208) target = $region40
        $region39: #{tpu_custom_call.1} parent=31 // pred_region
          %211 = dma.done [#allocation6], 512
        $region40: #{tpu_custom_call.1} parent=31 // pred_fallthru
          _
        %s212 = sand.u32 %s41, 1
        %s213 = scalar_lea.sflag [#allocation3], %s212
        %s214 = sand.u32 %s41, 1
        %s215 = smul.addr %s214, 8
        %s216 = scalar_lea.vmem [#allocation2], %s215
        %p217 = pneg %p54
        %p218 = pneg %p51
        %p219 = pneg %p80
        %p220 = pneg %p77
        %p221 = scmp.lt.s32.totalorder %s26, 0
        %s222 = scalar_select %p221, %s26, 0
        %s223 = scalar_lea.vmem %s2, %s222
        %p224 = pneg %p106
        %p225 = pneg %p103
        %p226 = pneg %p134
        %p227 = pneg %p131
        %s228 = sand.u32 %s121, 1
        %s229 = scalar_lea.sflag [#allocation4], %s228
        %s230 = sand.u32 %s121, 1
        %s231 = smul.addr %s230, 8
        %s232 = scalar_lea.vmem [#allocation7], %s231
        %p233 = scmp.lt.s32.totalorder %s26, 0
        %s234 = scalar_select %p233, %s26, 0
        %s235 = scalar_lea.vmem %s2, %s234
        %v236 = vld [vmem:[%s203] sm:$0xff]
        %vm237 = vcmask 261120
        %v238 = vsel %vm237, %v236, 0.0
        %239 = vadd.xlane.f32.xlu0 %v238
        %v240 = vpop.xlane.xlu0 %239
        %v241 = vrcp.pop 32.0
        %v242 = vmul.f32 %v240, %v241
        %v243 = vsub.f32 %v236, %v242
        %v244 = vmul.f32 %v243, %v243
        %v245 = vsel %vm237, %v244, 0.0
        %246 = vadd.xlane.f32.xlu0 %v245
        %v247 = vpop.xlane.xlu0 %246
        %v248 = vmul.f32 %v247, %v241
        %v249 = vadd.f32 %v248, 1e-05
        %v250 = vrsqrt.pop %v249
        %v251 = vmul.f32 %v243, %v250
        %v252 = vld [vmem:[#allocation5] sm:$0xff]
        %v253 = vld [vmem:[#allocation5 + $0x8] sm:$0xff]
        %v254 = vld [vmem:[#allocation5 + $0x10] sm:$0xff]
        %v255 = vld [vmem:[#allocation5 + $0x18] sm:$0xff]
        %v256 = vld [vmem:[%s235] sm:$0x1]
        %v258 = vlaneseq
        %v259 = vshrl.u32 %v258, 7
        %v260 = vsub.s32 0, %v259
        %v261 = vrot.slane %v256, %v260
        %v264 = vsel %vm237, %v251, 0
        %266 = vmatprep.subr.mxu0 0.0
        %267 = vmatpush1.msra.mxu0 %v252
        %268 = vmatprep.subr.mxu0 0.0
        %269 = vmatpush1.msra.mxu0 %v253
        %270 = vmatprep.subr.mxu0 0.0
        %271 = vmatpush1.msra.mxu0 %v254
        %272 = vmatprep.subr.mxu0 0.0
        %273 = vmatpush1.msra.mxu0 %v255
        %274 = vmatprep.subr.mxu0 0.0
        %275 = vmatpush1.msra.mxu0 0.0
        %276 = vmatprep.subr.mxu0 0.0
        %277 = vmatpush1.msra.mxu0 0.0
        %278 = vmatprep.subr.mxu0 0.0
        %279 = vmatpush1.msra.mxu0 0.0
        %280 = vmatprep.subr.mxu0 0.0
        %281 = vmatpush1.msra.mxu0 0.0
        %282 = vmatprep.subr.mxu0 0.0
        %283 = vmatpush1.msra.mxu0 0.0
        %284 = vmatprep.subr.mxu0 0.0
        %285 = vmatpush1.msra.mxu0 0.0
        %286 = vmatprep.subr.mxu0 0.0
        %287 = vmatpush1.msra.mxu0 0.0
        %288 = vmatprep.subr.mxu0 0.0
        %289 = vmatpush1.msra.mxu0 0.0
        %290 = vmatprep.subr.mxu0 0.0
        %291 = vmatpush1.msra.mxu0 0.0
        %292 = vmatprep.subr.mxu0 0.0
        %293 = vmatpush1.msra.mxu0 0.0
        %294 = vmatprep.subr.mxu0 0.0
        %295 = vmatpush1.msra.mxu0 0.0
        %296 = vmatprep.subr.mxu0 0.0
        %297 = vmatpush1.msra.mxu0 0.0
        %298 = vmatprep.subr.mxu0 0.0
        %299 = vmatpush1.msra.mxu0 0.0
        %300 = vmatprep.subr.mxu0 0.0
        %301 = vmatpush1.msra.mxu0 0.0
        %302 = vmatprep.subr.mxu0 0.0
        %303 = vmatpush1.msra.mxu0 0.0
        %304 = vmatprep.subr.mxu0 0.0
        %305 = vmatpush1.msra.mxu0 0.0
        %306 = vmatprep.subr.mxu0 0.0
        %307 = vmatpush1.msra.mxu0 0.0
        %308 = vmatprep.subr.mxu0 0.0
        %309 = vmatpush1.msra.mxu0 0.0
        %310 = vmatprep.subr.mxu0 0.0
        %311 = vmatpush1.msra.mxu0 0.0
        %312 = vmatprep.subr.mxu0 0.0
        %313 = vmatpush1.msra.mxu0 0.0
        %314 = vmatprep.subr.mxu0 0.0
        %315 = vmatpush1.msra.mxu0 0.0
        %316 = vmatprep.subr.mxu0 0.0
        %317 = vmatpush1.msra.mxu0 0.0
        %318 = vmatprep.subr.mxu0 0.0
        %319 = vmatpush1.msra.mxu0 0.0
        %320 = vmatprep.subr.mxu0 0.0
        %321 = vmatpush1.msra.mxu0 0.0
        %322 = vmatprep.subr.mxu0 0.0
        %323 = vmatpush1.msra.mxu0 0.0
        %324 = vmatprep.subr.mxu0 0.0
        %325 = vmatpush1.msra.mxu0 0.0
        %326 = vmatprep.subr.mxu0 0.0
        %327 = vmatpush1.msra.mxu0 0.0
        %328 = vmatprep.subr.mxu0 0.0
        %329 = vmatpush1.msra.mxu0 0.0
        %330 = vmatprep.mubr.f32.mxu0 0.0
        %331 = vmatmul.mubr.f32.gmra.mrb[0].mxu0 %v264
        %v332 = vpop.f32.mrb[0].mxu0
        %v333 = vadd.f32 %v261, %v332
        %v334 = vpop.f32.mrb[0].mxu0
        %335 = vdwg.mxu0
        %336 = vst.msk [vmem:[%s232] sm:$0xff] %vm237, %v333
        %s337 = sand.u32 %s121, 1
        %s338 = scalar_lea.sflag [#allocation4], %s337
        %s339 = sand.u32 %s121, 1
        %s340 = smul.addr %s339, 8
        %s341 = scalar_lea.vmem [#allocation7], %s340
        // Predicated region
        $region41: #{tpu_custom_call.1} parent=31 // pred_check
          %p342 = pneg %p131
        $region42: #{tpu_custom_call.1} parent=31 // pred_check_branch
          %344 = sbr.rel (%p342) target = $region44
        $region43: #{tpu_custom_call.1} parent=31 // pred_region
          %s346 = ssub.s32 128, 128
          %347 = vsyncadd %s338, %s346
          %s348 = sadd.s32 %s26, %s25
          %s349 = smul.addr %s348, 128
          %s350 = scalar_lea.hbm %s3, %s349
          %s352 = sshll.u32 %s341, 4
          %s353 = int_to_ptr.vmem [resolvable:$true] %s352
          %355 = dma.vmem_to_hbm [thread:$0]  %s353, 128, %s350, %s338
        $region44: #{tpu_custom_call.1} parent=31 // pred_fallthru
          _
      $region32: #{tpu_custom_call.1} parent=5 // pred_fallthru
        _
      %p356 = scmp.le.s32.totalorder 2, %s16
      // Predicated region
      $region45: #{tpu_custom_call.1} parent=5 // pred_check
        %p357 = pneg %p356
      $region46: #{tpu_custom_call.1} parent=5 // pred_check_branch
        %359 = sbr.rel (%p357) target = $region48
      $region47: #{tpu_custom_call.1} parent=5 // pred_region
        %s360 = ssub.s32 %s16, 2
        // Predicated region
        $region49: #{tpu_custom_call.1} parent=47 // pred_check
          %p361 = pneg %p137
        $region50: #{tpu_custom_call.1} parent=47 // pred_check_branch
          %363 = sbr.rel (%p361) target = $region52
        $region51: #{tpu_custom_call.1} parent=47 // pred_region
          %s364 = sand.u32 %s122, 1
          %s365 = scalar_lea.sflag [#allocation4], %s364
          %s366 = sand.u32 %s122, 1
          %s367 = smul.addr %s366, 8
          %s368 = scalar_lea.vmem [#allocation7], %s367
          %369 = dma.done %s365, 128
        $region52: #{tpu_custom_call.1} parent=47 // pred_fallthru
          _
      $region48: #{tpu_custom_call.1} parent=5 // pred_fallthru
        _
    $region6: #{tpu_custom_call.1} parent=1 // loop_footer
      %s20 = sadd.s32 1, %s16
    $region7: #{tpu_custom_call.1} parent=1 // loop_footer_branch
      %15 = sbr.rel target = $region3
    $region8: #{tpu_custom_call.1} parent=1 // loop_exit
      _
    %370 = vsyncpa [#allocation3], 1
    %s371 = scalar_lea.sflag [#allocation3], 1
    %372 = vsyncpa %s371, 1
    %373 = vsyncpa [#allocation6], 1
    %374 = vsyncpa [#allocation4], 1
    %s375 = scalar_lea.sflag [#allocation4], 1
    %376 = vsyncpa %s375, 1

</llo_original>
